<compile_context>
chip_gen: v7x
topology: tpu7x:2x2x1
jax: 0.10.0
libtpu: 0.0.40
codegen_flags: <defaults>
</compile_context>

<pallas_src>
import functools

import jax
import jax.numpy as jnp
from jax.experimental import pallas as pl
from jax.experimental.pallas import tpu as pltpu


def _round_up(n, m):
    return ((n + m - 1) // m) * m


def _impala_kernel(x_ref, w1_ref, b1_ref, w2_ref, b2_ref, wh_ref, bh_ref,
                   logits_ref, value_ref):
    # x: [TB, S] f32 (cast to bf16 in-kernel for the MXU); weights bf16 [in,out];
    # biases f32 [1, out]. Outputs: logits [TB, A] f32, value [TB, 1] f32.
    x = x_ref[...].astype(jnp.bfloat16)
    # shared layer 1: Linear + ReLU (f32 accumulation on the VPU)
    h1 = jnp.dot(x, w1_ref[...], preferred_element_type=jnp.float32) + b1_ref[...]
    h1 = jnp.maximum(h1, 0.0)
    # shared layer 2: Linear + ReLU
    h2 = jnp.dot(h1.astype(jnp.bfloat16), w2_ref[...],
                 preferred_element_type=jnp.float32) + b2_ref[...]
    h2 = jnp.maximum(h2, 0.0)
    # fused policy+value head: one [H, A+1] matmul, split across the two outputs
    head = jnp.dot(h2.astype(jnp.bfloat16), wh_ref[...],
                   preferred_element_type=jnp.float32) + bh_ref[...]
    A = logits_ref.shape[-1]
    logits_ref[...] = head[:, :A].astype(logits_ref.dtype)
    value_ref[...] = head[:, A:A + 1].astype(value_ref.dtype)


def prepare_params(params):
    """One-time layout prep for PyTorch-convention weights.

    Transposes Linear weights to [in, out], fuses the policy and value heads
    into a single [H, A+1] matmul (no lane padding), and casts matmul operands
    to bf16 (biases stay f32).
    """
    A = params["wp"].shape[0]
    w1 = params["w1"].T.astype(jnp.bfloat16)                 # [S, H]
    b1 = params["b1"].reshape(1, -1).astype(jnp.float32)     # [1, H]
    w2 = params["w2"].T.astype(jnp.bfloat16)                 # [H, H]
    b2 = params["b2"].reshape(1, -1).astype(jnp.float32)     # [1, H]
    wh = jnp.concatenate([params["wp"], params["wv"]], axis=0).T  # [H, A+1]
    wh = wh.astype(jnp.bfloat16)
    bh = jnp.concatenate([params["bp"], params["bv"]], axis=0)
    bh = bh.reshape(1, A + 1).astype(jnp.float32)            # [1, A+1]
    return dict(w1=w1, b1=b1, w2=w2, b2=b2, wh=wh, bh=bh)


@functools.partial(jax.jit, static_argnames=("action_dim", "block_b"))
def impala_forward(x, prepped, action_dim, *, block_b=1024):
    """IMPALA forward pass.

    Args:
      x: [B, state_dim] float32
      prepped: output of prepare_params()
      action_dim: number of actions (static)
    Returns:
      (action_logits [B, A] f32, value [B, 1] f32)
    """
    B, S = x.shape
    H = prepped["w1"].shape[1]
    A = action_dim

    # Batch tile: multiple of 8 (sublane aligned), capped at block_b, and also
    # capped at ceil(B/2) (rounded to 8) so that when the batch is large enough
    # the grid has >=2 blocks and both v7x TensorCores are used.
    TB = min(block_b, _round_up(B, 8))
    TB = min(TB, max(_round_up(pl.cdiv(B, 2), 8), 8))
    grid = (pl.cdiv(B, TB),)          # ragged last block is masked by Pallas

    res = lambda shape: pl.BlockSpec(shape, lambda i: (0, 0))  # VMEM-resident

    flops = 2 * B * (S * H + H * H + H * (A + 1))
    bytes_accessed = (
        x.size * x.dtype.itemsize
        + sum(v.size * v.dtype.itemsize for v in prepped.values())
        + B * (A + 1) * 4)

    logits, value = pl.pallas_call(
        _impala_kernel,
        out_shape=(jax.ShapeDtypeStruct((B, A), jnp.float32),
                   jax.ShapeDtypeStruct((B, 1), jnp.float32)),
        grid=grid,
        in_specs=[
            pl.BlockSpec((TB, S), lambda i: (i, 0)),   # x: tiled over batch
            res((S, H)), res((1, H)),                  # layer 1 (resident)
            res((H, H)), res((1, H)),                  # layer 2 (resident)
            res((H, A + 1)), res((1, A + 1)),          # fused head (resident)
        ],
        out_specs=(pl.BlockSpec((TB, A), lambda i: (i, 0)),
                   pl.BlockSpec((TB, 1), lambda i: (i, 0))),
        compiler_params=pltpu.CompilerParams(
            dimension_semantics=("parallel",)),        # megacore-shardable batch
        cost_estimate=pl.CostEstimate(
            flops=flops, transcendentals=0, bytes_accessed=bytes_accessed),
    )(x, prepped["w1"], prepped["b1"], prepped["w2"], prepped["b2"],
      prepped["wh"], prepped["bh"])

    return logits, value


def init_params(key, state_dim, action_dim, hidden_dim):
    """Deterministic init matching PyTorch nn.Linear default (uniform +-1/sqrt(fan_in))."""
    def linear(key, out_dim, in_dim):
        kw, kb = jax.random.split(key)
        bound = 1.0 / jnp.sqrt(in_dim)
        w = jax.random.uniform(kw, (out_dim, in_dim), jnp.float32, -bound, bound)
        b = jax.random.uniform(kb, (out_dim,), jnp.float32, -bound, bound)
        return w, b

    k1, k2, k3, k4 = jax.random.split(key, 4)
    w1, b1 = linear(k1, hidden_dim, state_dim)
    w2, b2 = linear(k2, hidden_dim, hidden_dim)
    wp, bp = linear(k3, action_dim, hidden_dim)
    wv, bv = linear(k4, 1, hidden_dim)
    return dict(w1=w1, b1=b1, w2=w2, b2=b2, wp=wp, bp=bp, wv=wv, bv=bv)


def reference_forward(x, p):
    h1 = jnp.maximum(x @ p["w1"].T + p["b1"], 0.0)
    h2 = jnp.maximum(h1 @ p["w2"].T + p["b2"], 0.0)
    return h2 @ p["wp"].T + p["bp"], h2 @ p["wv"].T + p["bv"]


if __name__ == "__main__":
    B, STATE_DIM, ACTION_DIM, HIDDEN_DIM = 8, 16, 4, 32

    key = jax.random.PRNGKey(0)
    kx, kp = jax.random.split(key)
    x = jax.random.normal(kx, (B, STATE_DIM), jnp.float32)
    params = init_params(kp, STATE_DIM, ACTION_DIM, HIDDEN_DIM)

    prepped = prepare_params(params)          # one-time layout prep
    logits, value = impala_forward(x, prepped, ACTION_DIM)
    jax.block_until_ready((logits, value))

    # correctness check vs pure-f32 JAX reference (bf16 matmul operands => loosened tol)
    # TODO(synk): keep an all-f32 matmul path if learner-side value precision matters.
    ref_logits, ref_value = reference_forward(x, params)
    assert logits.shape == (B, ACTION_DIM)
    assert value.shape == (B, 1)
    assert jnp.allclose(logits, ref_logits, atol=5e-2, rtol=5e-2)
    assert jnp.allclose(value, ref_value, atol=5e-2, rtol=5e-2)

    # ragged-batch check (B not a multiple of the tile -> masked trailing block)
    Br = 12
    xr = jax.random.normal(kx, (Br, STATE_DIM), jnp.float32)
    lr, vr = impala_forward(xr, prepped, ACTION_DIM)
    jax.block_until_ready((lr, vr))
    rl, rv = reference_forward(xr, params)
    assert lr.shape == (Br, ACTION_DIM) and vr.shape == (Br, 1)
    assert jnp.allclose(lr, rl, atol=5e-2, rtol=5e-2)
    assert jnp.allclose(vr, rv, atol=5e-2, rtol=5e-2)

    print("KERNEL_OK")
</pallas_src>

<mosaic_0001>
module attributes {stable_mosaic.version = 11 : i64} {
  func.func @_impala_kernel(%arg0: i32, %arg1: memref<8x16xf32, #tpu.memory_space<vmem>>, %arg2: memref<16x32xbf16, #tpu.memory_space<vmem>>, %arg3: memref<1x32xf32, #tpu.memory_space<vmem>>, %arg4: memref<32x32xbf16, #tpu.memory_space<vmem>>, %arg5: memref<1x32xf32, #tpu.memory_space<vmem>>, %arg6: memref<32x5xbf16, #tpu.memory_space<vmem>>, %arg7: memref<1x5xf32, #tpu.memory_space<vmem>>, %arg8: memref<8x4xf32, #tpu.memory_space<vmem>>, %arg9: memref<8x1xf32, #tpu.memory_space<vmem>>) attributes {dimension_semantics = [#tpu.dimension_semantics<parallel>], iteration_bounds = array<i64: 1>, scalar_prefetch = 0 : i64, scratch_operands = 0 : i64, tpu.core_type = #tpu.core_type<tc>, window_params = [{transform_indices = @transform_0, window_bounds = array<i64: 8, 16>}, {pipeline_mode = #tpu.pipeline_mode<synchronous>, transform_indices = @transform_1, window_bounds = array<i64: 16, 32>}, {pipeline_mode = #tpu.pipeline_mode<synchronous>, transform_indices = @transform_2, window_bounds = array<i64: 1, 32>}, {pipeline_mode = #tpu.pipeline_mode<synchronous>, transform_indices = @transform_3, window_bounds = array<i64: 32, 32>}, {pipeline_mode = #tpu.pipeline_mode<synchronous>, transform_indices = @transform_4, window_bounds = array<i64: 1, 32>}, {pipeline_mode = #tpu.pipeline_mode<synchronous>, transform_indices = @transform_5, window_bounds = array<i64: 32, 5>}, {pipeline_mode = #tpu.pipeline_mode<synchronous>, transform_indices = @transform_6, window_bounds = array<i64: 1, 5>}, {transform_indices = @transform_7, window_bounds = array<i64: 8, 4>}, {transform_indices = @transform_8, window_bounds = array<i64: 8, 1>}]} {
    %c0 = arith.constant 0 : index
    %c0_0 = arith.constant 0 : index
    %0 = vector.load %arg1[%c0, %c0_0] : memref<8x16xf32, #tpu.memory_space<vmem>>, vector<8x16xf32>
    %1 = arith.truncf %0 : vector<8x16xf32> to vector<8x16xbf16>
    %c0_1 = arith.constant 0 : index
    %c0_2 = arith.constant 0 : index
    %2 = vector.load %arg2[%c0_1, %c0_2] : memref<16x32xbf16, #tpu.memory_space<vmem>>, vector<16x32xbf16>
    %cst = arith.constant dense<0.000000e+00> : vector<8x32xf32>
    %3 = tpu.matmul %1, %2, %cst {dimension_numbers = #tpu.dot_dimension_numbers<[1], [0], [0], [1], [0, 0, 1, 1], [], []>} : vector<8x16xbf16>, vector<16x32xbf16>, vector<8x32xf32> -> vector<8x32xf32>
    %c0_3 = arith.constant 0 : index
    %c0_4 = arith.constant 0 : index
    %4 = vector.load %arg3[%c0_3, %c0_4] : memref<1x32xf32, #tpu.memory_space<vmem>>, vector<1x32xf32>
    %5 = vector.broadcast %4 : vector<1x32xf32> to vector<8x32xf32>
    %6 = arith.addf %3, %5 : vector<8x32xf32>
    %cst_5 = arith.constant 0.000000e+00 : f32
    %7 = vector.broadcast %cst_5 : f32 to vector<8x32xf32>
    %8 = arith.maximumf %6, %7 : vector<8x32xf32>
    %9 = arith.truncf %8 : vector<8x32xf32> to vector<8x32xbf16>
    %c0_6 = arith.constant 0 : index
    %c0_7 = arith.constant 0 : index
    %10 = vector.load %arg4[%c0_6, %c0_7] : memref<32x32xbf16, #tpu.memory_space<vmem>>, vector<32x32xbf16>
    %cst_8 = arith.constant dense<0.000000e+00> : vector<8x32xf32>
    %11 = tpu.matmul %9, %10, %cst_8 {dimension_numbers = #tpu.dot_dimension_numbers<[1], [0], [0], [1], [0, 0, 1, 1], [], []>} : vector<8x32xbf16>, vector<32x32xbf16>, vector<8x32xf32> -> vector<8x32xf32>
    %c0_9 = arith.constant 0 : index
    %c0_10 = arith.constant 0 : index
    %12 = vector.load %arg5[%c0_9, %c0_10] : memref<1x32xf32, #tpu.memory_space<vmem>>, vector<1x32xf32>
    %13 = vector.broadcast %12 : vector<1x32xf32> to vector<8x32xf32>
    %14 = arith.addf %11, %13 : vector<8x32xf32>
    %cst_11 = arith.constant 0.000000e+00 : f32
    %15 = vector.broadcast %cst_11 : f32 to vector<8x32xf32>
    %16 = arith.maximumf %14, %15 : vector<8x32xf32>
    %17 = arith.truncf %16 : vector<8x32xf32> to vector<8x32xbf16>
    %c0_12 = arith.constant 0 : index
    %c0_13 = arith.constant 0 : index
    %18 = vector.load %arg6[%c0_12, %c0_13] : memref<32x5xbf16, #tpu.memory_space<vmem>>, vector<32x5xbf16>
    %cst_14 = arith.constant dense<0.000000e+00> : vector<8x5xf32>
    %19 = tpu.matmul %17, %18, %cst_14 {dimension_numbers = #tpu.dot_dimension_numbers<[1], [0], [0], [1], [0, 0, 1, 1], [], []>} : vector<8x32xbf16>, vector<32x5xbf16>, vector<8x5xf32> -> vector<8x5xf32>
    %c0_15 = arith.constant 0 : index
    %c0_16 = arith.constant 0 : index
    %20 = vector.load %arg7[%c0_15, %c0_16] : memref<1x5xf32, #tpu.memory_space<vmem>>, vector<1x5xf32>
    %21 = vector.broadcast %20 : vector<1x5xf32> to vector<8x5xf32>
    %22 = arith.addf %19, %21 : vector<8x5xf32>
    %23 = vector.extract_strided_slice %22 {offsets = [0, 0], sizes = [8, 4], strides = [1, 1]} : vector<8x5xf32> to vector<8x4xf32>
    %c0_17 = arith.constant 0 : index
    %c0_18 = arith.constant 0 : index
    %24 = vector.load %arg8[%c0_17, %c0_18] : memref<8x4xf32, #tpu.memory_space<vmem>>, vector<8x4xf32>
    tpu.vector_store %arg8[%c0_17, %c0_18], %23 {strides = array<i32>} : memref<8x4xf32, #tpu.memory_space<vmem>>, vector<8x4xf32>,
    %25 = vector.extract_strided_slice %22 {offsets = [0, 4], sizes = [8, 1], strides = [1, 1]} : vector<8x5xf32> to vector<8x1xf32>
    %c0_19 = arith.constant 0 : index
    %c0_20 = arith.constant 0 : index
    %26 = vector.load %arg9[%c0_19, %c0_20] : memref<8x1xf32, #tpu.memory_space<vmem>>, vector<8x1xf32>
    tpu.vector_store %arg9[%c0_19, %c0_20], %25 {strides = array<i32>} : memref<8x1xf32, #tpu.memory_space<vmem>>, vector<8x1xf32>,
    return
  }
  func.func @transform_0(%arg0: i32) -> (i32, i32) {
    %c0_i32 = arith.constant 0 : i32
    %c0_i32_0 = arith.constant 0 : i32
    return %arg0, %c0_i32 : i32, i32
  }
  func.func @transform_1(%arg0: i32) -> (i32, i32) {
    %c0_i32 = arith.constant 0 : i32
    %c0_i32_0 = arith.constant 0 : i32
    %c0_i32_1 = arith.constant 0 : i32
    return %c0_i32, %c0_i32_0 : i32, i32
  }
  func.func @transform_2(%arg0: i32) -> (i32, i32) {
    %c0_i32 = arith.constant 0 : i32
    %c0_i32_0 = arith.constant 0 : i32
    %c0_i32_1 = arith.constant 0 : i32
    return %c0_i32, %c0_i32_0 : i32, i32
  }
  func.func @transform_3(%arg0: i32) -> (i32, i32) {
    %c0_i32 = arith.constant 0 : i32
    %c0_i32_0 = arith.constant 0 : i32
    %c0_i32_1 = arith.constant 0 : i32
    return %c0_i32, %c0_i32_0 : i32, i32
  }
  func.func @transform_4(%arg0: i32) -> (i32, i32) {
    %c0_i32 = arith.constant 0 : i32
    %c0_i32_0 = arith.constant 0 : i32
    %c0_i32_1 = arith.constant 0 : i32
    return %c0_i32, %c0_i32_0 : i32, i32
  }
  func.func @transform_5(%arg0: i32) -> (i32, i32) {
    %c0_i32 = arith.constant 0 : i32
    %c0_i32_0 = arith.constant 0 : i32
    %c0_i32_1 = arith.constant 0 : i32
    return %c0_i32, %c0_i32_0 : i32, i32
  }
  func.func @transform_6(%arg0: i32) -> (i32, i32) {
    %c0_i32 = arith.constant 0 : i32
    %c0_i32_0 = arith.constant 0 : i32
    %c0_i32_1 = arith.constant 0 : i32
    return %c0_i32, %c0_i32_0 : i32, i32
  }
  func.func @transform_7(%arg0: i32) -> (i32, i32) {
    %c0_i32 = arith.constant 0 : i32
    %c0_i32_0 = arith.constant 0 : i32
    return %arg0, %c0_i32 : i32, i32
  }
  func.func @transform_8(%arg0: i32) -> (i32, i32) {
    %c0_i32 = arith.constant 0 : i32
    %c0_i32_0 = arith.constant 0 : i32
    return %arg0, %c0_i32 : i32, i32
  }
}

</mosaic_0001>

<llo_original>
// kernel: impala_forward.1
$region0: #{impala_forward.1}
  #allocation0 [shape = 'u32[]', space=smem, size = 0x4, offset = 0x4, fixed_abs, tag = 'smem constant byte address 0x4 - core index']
  #allocation1 [shape = 'u32[144,128]{1,0:T(1,128)}', space=vmem, size = 0x12000, scoped, tag = 'internal scratch']
  %s0 = inlined_call_operand.vmem [shape: f32[8,16], index: 0, kind: input, shape index: {}]
  %s1 = inlined_call_operand.vmem [shape: bf16[16,32], index: 1, kind: input, shape index: {}]
  %s2 = inlined_call_operand.vmem [shape: f32[1,32], index: 2, kind: input, shape index: {}]
  %s3 = inlined_call_operand.vmem [shape: bf16[32,32], index: 3, kind: input, shape index: {}]
  %s4 = inlined_call_operand.vmem [shape: f32[1,32], index: 4, kind: input, shape index: {}]
  %s5 = inlined_call_operand.vmem [shape: bf16[32,5], index: 5, kind: input, shape index: {}]
  %s6 = inlined_call_operand.hbm [shape: f32[1,5], index: 6, kind: input, shape index: {}]
  %s7 = inlined_call_operand.vmem [shape: f32[8,4], index: 7, kind: output, shape index: {0}]
  %s8 = inlined_call_operand.vmem [shape: f32[8,1], index: 8, kind: output, shape index: {1}]
  %9 = xla_tuple %s7, %s8
  %s10 = sld [smem:[#allocation0]]
  $region50: #{impala_forward.1} parent=0
    _
  %s12 = ssub.s32 1, %s10
  %s13 = scalar_select 0, %s12, %s10
  $region1: #{impala_forward.1} parent=0
    #allocation2 [shape = 'u8[512]{0}', space=vmem, size = 0x400, scoped, tag = 'input window, operand 6, single buffered']
    #allocation3 [shape = 's32[1]{0}', space=sflag, size = 0x4, scoped, tag = 'scoped memory for impala_forward.1']
    %14 = vsyncpa [#allocation3], 0
    // Predicated region
    $region2: #{impala_forward.1} parent=1 // pred_check
      _
    $region3: #{impala_forward.1} parent=1 // pred_check_branch
      %16 = sbr.rel (0) target = $region5
    $region4: #{impala_forward.1} parent=1 // pred_region
      _
    $region5: #{impala_forward.1} parent=1 // pred_fallthru
      _
    // Predicated region
    $region6: #{impala_forward.1} parent=1 // pred_check
      _
    $region7: #{impala_forward.1} parent=1 // pred_check_branch
      %18 = sbr.rel (0) target = $region9
    $region8: #{impala_forward.1} parent=1 // pred_region
      _
    $region9: #{impala_forward.1} parent=1 // pred_fallthru
      _
    // Predicated region
    $region10: #{impala_forward.1} parent=1 // pred_check
      _
    $region11: #{impala_forward.1} parent=1 // pred_check_branch
      %20 = sbr.rel (0) target = $region13
    $region12: #{impala_forward.1} parent=1 // pred_region
      _
    $region13: #{impala_forward.1} parent=1 // pred_fallthru
      _
    // Predicated region
    $region14: #{impala_forward.1} parent=1 // pred_check
      _
    $region15: #{impala_forward.1} parent=1 // pred_check_branch
      %22 = sbr.rel (0) target = $region17
    $region16: #{impala_forward.1} parent=1 // pred_region
      _
    $region17: #{impala_forward.1} parent=1 // pred_fallthru
      _
    // Predicated region
    $region18: #{impala_forward.1} parent=1 // pred_check
      _
    $region19: #{impala_forward.1} parent=1 // pred_check_branch
      %24 = sbr.rel (0) target = $region21
    $region20: #{impala_forward.1} parent=1 // pred_region
      _
    $region21: #{impala_forward.1} parent=1 // pred_fallthru
      _
    // Predicated region
    $region22: #{impala_forward.1} parent=1 // pred_check
      _
    $region23: #{impala_forward.1} parent=1 // pred_check_branch
      %26 = sbr.rel (0) target = $region25
    $region24: #{impala_forward.1} parent=1 // pred_region
      _
    $region25: #{impala_forward.1} parent=1 // pred_fallthru
      _
    // Predicated region
    $region26: #{impala_forward.1} parent=1 // pred_check
      _
    $region27: #{impala_forward.1} parent=1 // pred_check_branch
      %28 = sbr.rel (0) target = $region29
    $region28: #{impala_forward.1} parent=1 // pred_region
      %s30 = ssub.s32 16, 16
      %31 = vsyncadd [#allocation3], %s30
      %s33 = sshll.u32 [#allocation2], 4
      %s34 = int_to_ptr.vmem [resolvable:$true] %s33
      %36 = dma.hbm_to_vmem [thread:$0]  %s6, 16, %s34, [#allocation3]
    $region29: #{impala_forward.1} parent=1 // pred_fallthru
      _
    // Predicated region
    $region30: #{impala_forward.1} parent=1 // pred_check
      _
    $region31: #{impala_forward.1} parent=1 // pred_check_branch
      %38 = sbr.rel (0) target = $region33
    $region32: #{impala_forward.1} parent=1 // pred_region
      %39 = dma.done [#allocation3], 16
    $region33: #{impala_forward.1} parent=1 // pred_fallthru
      _
    %v41 = vld [vmem:[%s0] sm:$0xff]
    %v42 = vpack.c.bf16 %v41, %v41
    %v43 = vld [vmem:[%s1] sm:$0xf]
    %v44 = vld [vmem:[%s1 + $0x4] sm:$0xf]
    %v45 = vld [vmem:[%s2] sm:$0x1]
    %v47 = vlaneseq
    %v48 = vshrl.u32 %v47, 7
    %v49 = vsub.s32 0, %v48
    %v50 = vrot.slane %v45, %v49
    %v54 = vunpack.c.l.b16 %v43
    %v55 = vunpack.c.l.b16 %v44
    %v56 = vpack.c.b16 %v55, %v54
    %vm58 = vcmask 130048
    %v60 = vsel %vm58, %v42, 0
    %62 = vmatprep.subr.bf16.mxu0 0
    %63 = vmatpush1.bf16.msra.mxu0 %v56
    %64 = vmatprep.subr.bf16.mxu0 0
    %65 = vmatpush1.bf16.msra.mxu0 0
    %66 = vmatprep.subr.bf16.mxu0 0
    %67 = vmatpush1.bf16.msra.mxu0 0
    %68 = vmatprep.subr.bf16.mxu0 0
    %69 = vmatpush1.bf16.msra.mxu0 0
    %70 = vmatprep.subr.bf16.mxu0 0
    %71 = vmatpush1.bf16.msra.mxu0 0
    %72 = vmatprep.subr.bf16.mxu0 0
    %73 = vmatpush1.bf16.msra.mxu0 0
    %74 = vmatprep.subr.bf16.mxu0 0
    %75 = vmatpush1.bf16.msra.mxu0 0
    %76 = vmatprep.subr.bf16.mxu0 0
    %77 = vmatpush1.bf16.msra.mxu0 0
    %78 = vmatprep.subr.bf16.mxu0 0
    %79 = vmatpush1.bf16.msra.mxu0 0
    %80 = vmatprep.subr.bf16.mxu0 0
    %81 = vmatpush1.bf16.msra.mxu0 0
    %82 = vmatprep.subr.bf16.mxu0 0
    %83 = vmatpush1.bf16.msra.mxu0 0
    %84 = vmatprep.subr.bf16.mxu0 0
    %85 = vmatpush1.bf16.msra.mxu0 0
    %86 = vmatprep.subr.bf16.mxu0 0
    %87 = vmatpush1.bf16.msra.mxu0 0
    %88 = vmatprep.subr.bf16.mxu0 0
    %89 = vmatpush1.bf16.msra.mxu0 0
    %90 = vmatprep.subr.bf16.mxu0 0
    %91 = vmatpush1.bf16.msra.mxu0 0
    %92 = vmatprep.subr.bf16.mxu0 0
    %93 = vmatpush1.bf16.msra.mxu0 0
    %94 = vmatprep.mubr.bf16.mxu0 0
    %95 = vmatmul.mubr.bf16.gmra.mrb[0].mxu0 %v60
    %v96 = vpop.f32.mrb[0].mxu0
    %v97 = vadd.f32 %v50, %v96
    %v98 = vpop.f32.mrb[0].mxu0
    %v99 = vpop.f32.mrb[0].mxu0
    %v100 = vpop.f32.mrb[0].mxu0
    %101 = vdwg.mxu0
    %v102 = vmax.f32 %v97, 0.0
    %v103 = vpack.c.bf16 %v102, %v102
    %v104 = vld [vmem:[%s3] sm:$0xf]
    %v105 = vld [vmem:[%s3 + $0x4] sm:$0xf]
    %v106 = vld [vmem:[%s3 + $0x8] sm:$0xf]
    %v107 = vld [vmem:[%s3 + $0xc] sm:$0xf]
    %v108 = vld [vmem:[%s4] sm:$0x1]
    %v110 = vlaneseq
    %v111 = vshrl.u32 %v110, 7
    %v112 = vsub.s32 0, %v111
    %v113 = vrot.slane %v108, %v112
    %v119 = vunpack.c.l.b16 %v104
    %v120 = vunpack.c.l.b16 %v105
    %v121 = vunpack.c.l.b16 %v106
    %v122 = vunpack.c.l.b16 %v107
    %v123 = vpack.c.b16 %v120, %v119
    %v124 = vpack.c.b16 %v122, %v121
    %vm127 = vcmask 261120
    %v129 = vsel %vm127, %v103, 0
    %131 = vmatprep.subr.bf16.mxu0 0
    %132 = vmatpush1.bf16.msra.mxu0 %v123
    %133 = vmatprep.subr.bf16.mxu0 0
    %134 = vmatpush1.bf16.msra.mxu0 %v124
    %135 = vmatprep.subr.bf16.mxu0 0
    %136 = vmatpush1.bf16.msra.mxu0 0
    %137 = vmatprep.subr.bf16.mxu0 0
    %138 = vmatpush1.bf16.msra.mxu0 0
    %139 = vmatprep.subr.bf16.mxu0 0
    %140 = vmatpush1.bf16.msra.mxu0 0
    %141 = vmatprep.subr.bf16.mxu0 0
    %142 = vmatpush1.bf16.msra.mxu0 0
    %143 = vmatprep.subr.bf16.mxu0 0
    %144 = vmatpush1.bf16.msra.mxu0 0
    %145 = vmatprep.subr.bf16.mxu0 0
    %146 = vmatpush1.bf16.msra.mxu0 0
    %147 = vmatprep.subr.bf16.mxu0 0
    %148 = vmatpush1.bf16.msra.mxu0 0
    %149 = vmatprep.subr.bf16.mxu0 0
    %150 = vmatpush1.bf16.msra.mxu0 0
    %151 = vmatprep.subr.bf16.mxu0 0
    %152 = vmatpush1.bf16.msra.mxu0 0
    %153 = vmatprep.subr.bf16.mxu0 0
    %154 = vmatpush1.bf16.msra.mxu0 0
    %155 = vmatprep.subr.bf16.mxu0 0
    %156 = vmatpush1.bf16.msra.mxu0 0
    %157 = vmatprep.subr.bf16.mxu0 0
    %158 = vmatpush1.bf16.msra.mxu0 0
    %159 = vmatprep.subr.bf16.mxu0 0
    %160 = vmatpush1.bf16.msra.mxu0 0
    %161 = vmatprep.subr.bf16.mxu0 0
    %162 = vmatpush1.bf16.msra.mxu0 0
    %163 = vmatprep.mubr.bf16.mxu0 0
    %164 = vmatmul.mubr.bf16.gmra.mrb[0].mxu0 %v129
    %v165 = vpop.f32.mrb[0].mxu0
    %v166 = vadd.f32 %v113, %v165
    %v167 = vpop.f32.mrb[0].mxu0
    %v168 = vpop.f32.mrb[0].mxu0
    %v169 = vpop.f32.mrb[0].mxu0
    %170 = vdwg.mxu0
    %v171 = vmax.f32 %v166, 0.0
    %v172 = vpack.c.bf16 %v171, %v171
    %v173 = vld [vmem:[%s5] sm:$0xf]
    %v174 = vld [vmem:[%s5 + $0x4] sm:$0xf]
    %v175 = vld [vmem:[%s5 + $0x8] sm:$0xf]
    %v176 = vld [vmem:[%s5 + $0xc] sm:$0xf]
    %v177 = vld [vmem:[#allocation2] sm:$0x1]
    %v179 = vlaneseq
    %v180 = vshrl.u32 %v179, 7
    %v181 = vsub.s32 0, %v180
    %v182 = vrot.slane %v177, %v181
    %v188 = vunpack.c.l.b16 %v173
    %v189 = vunpack.c.l.b16 %v174
    %v190 = vunpack.c.l.b16 %v175
    %v191 = vunpack.c.l.b16 %v176
    %v192 = vpack.c.b16 %v189, %v188
    %v193 = vpack.c.b16 %v191, %v190
    %v197 = vsel %vm127, %v172, 0
    %199 = vmatprep.subr.bf16.mxu0 0
    %200 = vmatpush1.bf16.msra.mxu0 %v192
    %201 = vmatprep.subr.bf16.mxu0 0
    %202 = vmatpush1.bf16.msra.mxu0 %v193
    %203 = vmatprep.subr.bf16.mxu0 0
    %204 = vmatpush1.bf16.msra.mxu0 0
    %205 = vmatprep.subr.bf16.mxu0 0
    %206 = vmatpush1.bf16.msra.mxu0 0
    %207 = vmatprep.subr.bf16.mxu0 0
    %208 = vmatpush1.bf16.msra.mxu0 0
    %209 = vmatprep.subr.bf16.mxu0 0
    %210 = vmatpush1.bf16.msra.mxu0 0
    %211 = vmatprep.subr.bf16.mxu0 0
    %212 = vmatpush1.bf16.msra.mxu0 0
    %213 = vmatprep.subr.bf16.mxu0 0
    %214 = vmatpush1.bf16.msra.mxu0 0
    %215 = vmatprep.subr.bf16.mxu0 0
    %216 = vmatpush1.bf16.msra.mxu0 0
    %217 = vmatprep.subr.bf16.mxu0 0
    %218 = vmatpush1.bf16.msra.mxu0 0
    %219 = vmatprep.subr.bf16.mxu0 0
    %220 = vmatpush1.bf16.msra.mxu0 0
    %221 = vmatprep.subr.bf16.mxu0 0
    %222 = vmatpush1.bf16.msra.mxu0 0
    %223 = vmatprep.subr.bf16.mxu0 0
    %224 = vmatpush1.bf16.msra.mxu0 0
    %225 = vmatprep.subr.bf16.mxu0 0
    %226 = vmatpush1.bf16.msra.mxu0 0
    %227 = vmatprep.subr.bf16.mxu0 0
    %228 = vmatpush1.bf16.msra.mxu0 0
    %229 = vmatprep.subr.bf16.mxu0 0
    %230 = vmatpush1.bf16.msra.mxu0 0
    %231 = vmatprep.mubr.bf16.mxu0 0
    %232 = vmatmul.mubr.bf16.gmra.mrb[0].mxu0 %v197
    %v233 = vpop.f32.mrb[0].mxu0
    %v234 = vadd.f32 %v182, %v233
    %v235 = vpop.f32.mrb[0].mxu0
    %v236 = vpop.f32.mrb[0].mxu0
    %v237 = vpop.f32.mrb[0].mxu0
    %238 = vdwg.mxu0
    %vm239 = vcmask 31744
    %240 = vst.msk [vmem:[%s7] sm:$0xff] %vm239, %v234
    %242 = vrot.lane.b32.xlu0 %v234, 124
    %v243 = vpop.permute.xlu0 %242
    %vm245 = vcmask 7168
    %246 = vst.msk [vmem:[%s8] sm:$0xff] %vm245, %v243
    // Predicated region
    $region34: #{impala_forward.1} parent=1 // pred_check
      _
    $region35: #{impala_forward.1} parent=1 // pred_check_branch
      %248 = sbr.rel (0) target = $region37
    $region36: #{impala_forward.1} parent=1 // pred_region
      _
    $region37: #{impala_forward.1} parent=1 // pred_fallthru
      _
    // Predicated region
    $region38: #{impala_forward.1} parent=1 // pred_check
      _
    $region39: #{impala_forward.1} parent=1 // pred_check_branch
      %250 = sbr.rel (0) target = $region41
    $region40: #{impala_forward.1} parent=1 // pred_region
      _
    $region41: #{impala_forward.1} parent=1 // pred_fallthru
      _
    // Predicated region
    $region42: #{impala_forward.1} parent=1 // pred_check
      _
    $region43: #{impala_forward.1} parent=1 // pred_check_branch
      %252 = sbr.rel (0) target = $region45
    $region44: #{impala_forward.1} parent=1 // pred_region
      _
    $region45: #{impala_forward.1} parent=1 // pred_fallthru
      _
    // Predicated region
    $region46: #{impala_forward.1} parent=1 // pred_check
      _
    $region47: #{impala_forward.1} parent=1 // pred_check_branch
      %254 = sbr.rel (0) target = $region49
    $region48: #{impala_forward.1} parent=1 // pred_region
      _
    $region49: #{impala_forward.1} parent=1 // pred_fallthru
      _
    %255 = vsyncpa [#allocation3], 1

</llo_original>
